<compile_context>
chip_gen: v5e
topology: v5e:2x2
jax: 0.10.0
libtpu: 0.0.40
codegen_flags: <defaults>
</compile_context>

<pallas_src>
import math
import numpy as np

import jax
import jax.numpy as jnp
from jax.experimental import pallas as pl
from jax.experimental.pallas import tpu as pltpu


# ----------------------------------------------------------------------------
# constants
# ----------------------------------------------------------------------------
def _silu_second_moment_const() -> float:
    """1 / sqrt(E[silu(z)^2]) for z ~ N(0,1)  (e3nn normalize2mom)."""
    z = np.linspace(-12.0, 12.0, 200001)
    dz = z[1] - z[0]
    pdf = np.exp(-0.5 * z * z) / np.sqrt(2.0 * np.pi)
    silu = z / (1.0 + np.exp(-z))
    m2 = float(np.sum(silu * silu * pdf) * dz)
    return 1.0 / math.sqrt(m2)


ACT_CONST = _silu_second_moment_const()        # ~1.679
C_S = math.sin(math.pi / 8.0)                  # self-connection mixing (sc.output_mask == 1)
C_X = math.cos(math.pi / 8.0)

_LANES = 128


def _round_up(x, m):
    return (x + m - 1) // m * m


# ----------------------------------------------------------------------------
# Fused, batched MessagePassing: [Conv, Gate] x (L-1) + Conv in ONE Pallas kernel
# ----------------------------------------------------------------------------
def make_message_passing(n_graphs, n_nodes, n_edges, conv_dims, d_edge_scalars,
                         d_fc_hidden):
    """conv_dims: list of (c_in, c_out) per Convolution; a Gate follows every conv
    except the last. Returns (apply, pack_weights)."""
    n_layers = len(conv_dims)
    sum_cin = sum(ci for ci, _ in conv_dims)
    dh_all = n_layers * d_fc_hidden

    # static layout of the packed weight slab [n_slab_rows, 128]
    #   block 0: fc0_all  [d0, L*dh]         (per-layer fc0, concatenated on lanes)
    #   block 1: fc1_bd   [L*dh, sum(c_in)]  (block-diagonal of per-layer fc1)
    #   per layer l: block 2+2l: w_scl [c_in, c_in+c_out]   (lin1 | sc, pre-scaled)
    #                block 3+2l: w_ln2 [c_in, c_out]
    block_shapes = [(d_edge_scalars, dh_all), (dh_all, sum_cin)]
    for c_in, c_out in conv_dims:
        block_shapes.append((c_in, c_in + c_out))
        block_shapes.append((c_in, c_out))
    row_offsets, r = [], 0
    for rows, cols in block_shapes:
        assert cols <= _LANES, "weight block wider than one lane tile"
        row_offsets.append(r)
        r += _round_up(rows, 8)
    n_slab_rows = _round_up(r, 8)

    def kernel(x_ref, src_ref, dst_ref, escal_ref, w_ref, out_ref):
        # gather/scatter one-hot operands: built once per graph, bf16 (0/1 exact).
        lane_n = jax.lax.broadcasted_iota(jnp.int32, (n_edges, n_nodes), 1)
        src_oh = (lane_n == src_ref[...]).astype(jnp.bfloat16)         # [E, N]
        row_n = jax.lax.broadcasted_iota(jnp.int32, (n_nodes, n_edges), 0)
        dst_oh_t = (row_n == dst_ref[...]).astype(jnp.bfloat16)        # [N, E]

        def wblk(idx):
            rows, cols = block_shapes[idx]
            r0 = row_offsets[idx]
            return w_ref[r0:r0 + rows, :cols]                          # static slice

        # edge-FC path: depends only on edge_scalars -> hoisted, all layers at once.
        escal = escal_ref[...]                                         # [E, d0]
        h = jnp.dot(escal, wblk(0), preferred_element_type=jnp.float32)      # [E, L*dh]
        h = h * jax.nn.sigmoid(h)            # SiLU; normalize2mom folded into fc1
        w_tp_all = jnp.dot(h, wblk(1), preferred_element_type=jnp.float32)   # [E, sum_cin]

        # NOTE: default MXU precision (operands rounded to bf16); matches the f32
        # reference at the ~5e-2 level. node_attr==1 and edge_sh==1 multiplies are
        # statically elided for this instantiation.
        x = x_ref[...]                                                 # [N, c_in]
        tp_off = 0
        for layer, (c_in, c_out) in enumerate(conv_dims):
            w_scl = wblk(2 + 2 * layer)                                # [c_in, c_in+c_out]
            w_ln2 = wblk(3 + 2 * layer)                                # [c_in, c_out]

            # lin1 ‖ sc from ONE matmul; lin1 at lane offset 0 (feeds gather path).
            lin1_sc = jnp.dot(x, w_scl, preferred_element_type=jnp.float32)
            lin1 = lin1_sc[:, :c_in]
            sc = lin1_sc[:, c_in:]              # already scaled by C_S / sqrt(c_in)

            w_tp = w_tp_all[:, tp_off:tp_off + c_in]                   # [E, c_in]
            tp_off += c_in

            # gather node_features[edge_src] via bf16 one-hot matmul (MXU)
            xg = jnp.dot(src_oh, lin1.astype(jnp.bfloat16),
                         preferred_element_type=jnp.float32)           # [E, c_in]
            # 'uvu' TensorProduct with l=0 edge attr: per-edge elementwise product
            edge_feat = xg * w_tp
            # scatter-add onto edge_dst via bf16 one-hot matmul; 1/sqrt(num_neighbors),
            # 1/sqrt(c_mid) and C_X are folded into w_ln2
            agg = jnp.dot(dst_oh_t, edge_feat.astype(jnp.bfloat16),
                          preferred_element_type=jnp.float32)          # [N, c_in]
            conv = jnp.dot(agg, w_ln2, preferred_element_type=jnp.float32)   # [N, c_out]

            x = sc + conv
            if layer < n_layers - 1:
                # Gate (scalar irreps only) == normalized SiLU; the normalize2mom
                # constant is folded into the NEXT layer's w_scl at init.
                x = x * jax.nn.sigmoid(x)

        out_ref[...] = x.astype(out_ref.dtype)

    c_in0 = conv_dims[0][0]
    c_out_final = conv_dims[-1][1]

    call = pl.pallas_call(
        kernel,
        out_shape=jax.ShapeDtypeStruct((n_graphs, n_nodes, c_out_final), jnp.float32),
        grid=(n_graphs,),
        in_specs=[
            pl.BlockSpec((None, n_nodes, c_in0), lambda b: (b, 0, 0)),
            pl.BlockSpec((None, n_edges, 1), lambda b: (b, 0, 0)),
            pl.BlockSpec((None, 1, n_edges), lambda b: (b, 0, 0)),
            pl.BlockSpec((None, n_edges, d_edge_scalars), lambda b: (b, 0, 0)),
            # weight slab: same block every grid step -> DMA'd once (revisited).
            pl.BlockSpec((n_slab_rows, _LANES), lambda b: (0, 0)),
        ],
        out_specs=pl.BlockSpec((None, n_nodes, c_out_final), lambda b: (b, 0, 0)),
        compiler_params=pltpu.CompilerParams(dimension_semantics=("parallel",)),
    )

    def pack_weights(folded_params):
        """Pack all (pre-scaled) per-layer weights into one lane-dense f32 slab."""
        blocks = [jnp.concatenate([fp[0] for fp in folded_params], axis=1)]  # fc0_all
        fc1_bd = np.zeros((dh_all, sum_cin), np.float32)
        off = 0
        for l, (ci, _) in enumerate(conv_dims):
            fc1_bd[l * d_fc_hidden:(l + 1) * d_fc_hidden, off:off + ci] = \
                np.asarray(folded_params[l][1])
            off += ci
        blocks.append(jnp.asarray(fc1_bd))
        for l in range(n_layers):
            blocks.append(folded_params[l][2])      # w_scl  (lin1 | sc)
            blocks.append(folded_params[l][3])      # w_ln2
        slab = np.zeros((n_slab_rows, _LANES), np.float32)
        for (rows, cols), r0, blk in zip(block_shapes, row_offsets, blocks):
            slab[r0:r0 + rows, :cols] = np.asarray(blk)
        return jnp.asarray(slab)

    def apply(x, edge_src, edge_dst, edge_scalars, weight_slab):
        src = edge_src.reshape(n_graphs, n_edges, 1).astype(jnp.int32)
        dst = edge_dst.reshape(n_graphs, 1, n_edges).astype(jnp.int32)
        return call(x, src, dst, edge_scalars, weight_slab)

    return apply, pack_weights


# ----------------------------------------------------------------------------
# parameter init (e3nn initializes weights ~ N(0,1)) + constant folding
# ----------------------------------------------------------------------------
def init_conv_params(key, c_in, c_out, d_edge_scalars, d_fc_hidden):
    ks = jax.random.split(key, 5)
    return dict(
        w_fc0=jax.random.normal(ks[0], (d_edge_scalars, d_fc_hidden), jnp.float32),
        w_fc1=jax.random.normal(ks[1], (d_fc_hidden, c_in), jnp.float32),  # tp.weight_numel = c_in
        w_sc=jax.random.normal(ks[2], (c_in, c_out), jnp.float32),
        w_lin1=jax.random.normal(ks[3], (c_in, c_in), jnp.float32),
        w_lin2=jax.random.normal(ks[4], (c_in, c_out), jnp.float32),
    )


def fold_conv_params(p, c_in, c_out, d_edge_scalars, d_fc_hidden, num_neighbors,
                     preceded_by_gate):
    """Fold every static normalization / mixing constant into the weights.

    preceded_by_gate: this layer's input comes out of a Gate whose normalize2mom
    constant (ACT_CONST) is NOT applied in-kernel -> folded here instead.
    """
    inv_sqrt_in = 1.0 / math.sqrt(c_in)        # FCTP path norm, attr mul = 1
    inv_sqrt_mid = 1.0 / math.sqrt(c_in)       # 'uvu' keeps multiplicity -> mid = c_in
    inv_sqrt_nb = 1.0 / math.sqrt(num_neighbors)
    inv_sqrt_d0 = 1.0 / math.sqrt(d_edge_scalars)
    inv_sqrt_dh = 1.0 / math.sqrt(d_fc_hidden)
    g = ACT_CONST if preceded_by_gate else 1.0

    w_fc0 = p["w_fc0"] * inv_sqrt_d0
    w_fc1 = p["w_fc1"] * (ACT_CONST * inv_sqrt_dh)
    w_scl = jnp.concatenate(
        [p["w_lin1"] * (inv_sqrt_in * g),           # lin1 block (lane offset 0)
         p["w_sc"] * (C_S * inv_sqrt_in * g)],      # self-connection block
        axis=1)                                     # [c_in, c_in + c_out]
    w_ln2 = p["w_lin2"] * (C_X * inv_sqrt_nb * inv_sqrt_mid)
    return (w_fc0, w_fc1, w_scl, w_ln2)


# ----------------------------------------------------------------------------
# pure-JAX reference (original, un-folded formulation) for correctness check
# ----------------------------------------------------------------------------
def reference_forward(x, attr, src, dst, esh, escal, raw_params, conv_dims,
                      d_edge_scalars, d_fc_hidden, num_neighbors):
    n_nodes = x.shape[0]
    inv_nb = 1.0 / math.sqrt(num_neighbors)
    inv_d0 = 1.0 / math.sqrt(d_edge_scalars)
    inv_dh = 1.0 / math.sqrt(d_fc_hidden)
    for i, (c_in, c_out) in enumerate(conv_dims):
        p = raw_params[i]
        inv_in = 1.0 / math.sqrt(c_in)
        xa = x * attr
        sc = xa @ p["w_sc"] * inv_in
        lin1 = xa @ p["w_lin1"] * inv_in
        h = escal @ p["w_fc0"] * inv_d0
        h = ACT_CONST * h * jax.nn.sigmoid(h)
        w_tp = h @ p["w_fc1"] * inv_dh
        xg = lin1[src]
        edge_feat = xg * esh * w_tp
        agg = jnp.zeros((n_nodes, c_in), jnp.float32).at[dst].add(edge_feat) * inv_nb
        conv = (agg * attr) @ p["w_lin2"] * inv_in
        x = C_S * sc + C_X * conv
        if i < len(conv_dims) - 1:
            x = ACT_CONST * x * jax.nn.sigmoid(x)
    return x


# ----------------------------------------------------------------------------
if __name__ == "__main__":
    key = jax.random.PRNGKey(0)

    B = 4                          # graphs per batch (parallel grid axis / megacore)
    N, E = 16, 64                  # nodes, edges per graph
    c_in, c_hidden, c_out = 8, 32, 8
    d_edge_scalars, d_fc_hidden = 8, 16
    num_neighbors = 4.0

    k_x, k_es, k_src, k_dst, k_p = jax.random.split(key, 5)
    node_features = jax.random.normal(k_x, (B, N, c_in), jnp.float32)
    edge_scalars = jax.random.normal(k_es, (B, E, d_edge_scalars), jnp.float32)
    edge_src = jax.random.randint(k_src, (B, E), 0, N, jnp.int32)
    edge_dst = jax.random.randint(k_dst, (B, E), 0, N, jnp.int32)
    # node_attr "1x0e" == 1.0 and edge_attr "1x0e" (Y_0) == 1.0: statically elided.

    # channel plan for the 3 Convolutions (2 gated layers + final output layer)
    conv_dims = [(c_in, c_hidden), (c_hidden, c_hidden), (c_hidden, c_out)]
    pkeys = jax.random.split(k_p, len(conv_dims))
    raw_params = [init_conv_params(pk, ci, co, d_edge_scalars, d_fc_hidden)
                  for pk, (ci, co) in zip(pkeys, conv_dims)]
    folded_params = [
        fold_conv_params(p, ci, co, d_edge_scalars, d_fc_hidden, num_neighbors,
                         preceded_by_gate=(i > 0))
        for i, (p, (ci, co)) in enumerate(zip(raw_params, conv_dims))
    ]

    mp, pack_weights = make_message_passing(B, N, E, conv_dims,
                                            d_edge_scalars, d_fc_hidden)
    weight_slab = pack_weights(folded_params)
    out = mp(node_features, edge_src, edge_dst, edge_scalars, weight_slab)
    out = jax.block_until_ready(out)

    assert out.shape == (B, N, c_out), out.shape
    assert bool(jnp.all(jnp.isfinite(out)))

    # correctness vs. pure-JAX reference (loose tolerance: default MXU precision)
    node_attr = jnp.ones((N, 1), jnp.float32)
    edge_attr = jnp.ones((E, 1), jnp.float32)
    ref = np.stack([
        np.asarray(reference_forward(node_features[b], node_attr, edge_src[b],
                                     edge_dst[b], edge_attr, edge_scalars[b],
                                     raw_params, conv_dims, d_edge_scalars,
                                     d_fc_hidden, num_neighbors))
        for b in range(B)
    ])
    np.testing.assert_allclose(np.asarray(out), ref, rtol=5e-2, atol=5e-2)

    print("KERNEL_OK")
</pallas_src>

<mosaic_0001>
module attributes {stable_mosaic.version = 11 : i64} {
  func.func @kernel(%arg0: i32, %arg1: memref<1x16x8xf32, #tpu.memory_space<vmem>>, %arg2: memref<1x64x1xi32, #tpu.memory_space<vmem>>, %arg3: memref<1x1x64xi32, #tpu.memory_space<vmem>>, %arg4: memref<1x64x8xf32, #tpu.memory_space<vmem>>, %arg5: memref<200x128xf32, #tpu.memory_space<vmem>>, %arg6: memref<1x16x8xf32, #tpu.memory_space<vmem>>) attributes {dimension_semantics = [#tpu.dimension_semantics<parallel>], iteration_bounds = array<i64: 4>, scalar_prefetch = 0 : i64, scratch_operands = 0 : i64, tpu.core_type = #tpu.core_type<tc>, window_params = [{transform_indices = @transform_0, window_bounds = array<i64: 1, 16, 8>}, {transform_indices = @transform_1, window_bounds = array<i64: 1, 64, 1>}, {transform_indices = @transform_2, window_bounds = array<i64: 1, 1, 64>}, {transform_indices = @transform_3, window_bounds = array<i64: 1, 64, 8>}, {pipeline_mode = #tpu.pipeline_mode<synchronous>, transform_indices = @transform_4, window_bounds = array<i64: 200, 128>}, {transform_indices = @transform_5, window_bounds = array<i64: 1, 16, 8>}]} {
    %0 = tpu.iota {dimensions = array<i32: 1>} : vector<64x16xi32>
    %c0 = arith.constant 0 : index
    %c0_0 = arith.constant 0 : index
    %c0_1 = arith.constant 0 : index
    %1 = vector.load %arg2[%c0, %c0_0, %c0_1] : memref<1x64x1xi32, #tpu.memory_space<vmem>>, vector<1x64x1xi32>
    %2 = vector.shape_cast %1 : vector<1x64x1xi32> to vector<64x1xi32>
    %3 = vector.broadcast %2 : vector<64x1xi32> to vector<64x16xi32>
    %4 = arith.cmpi eq, %0, %3 : vector<64x16xi32>
    %5 = arith.extui %4 : vector<64x16xi1> to vector<64x16xi32>
    %6 = arith.sitofp %5 : vector<64x16xi32> to vector<64x16xf32>
    %7 = arith.truncf %6 : vector<64x16xf32> to vector<64x16xbf16>
    %8 = tpu.iota {dimensions = array<i32: 0>} : vector<16x64xi32>
    %c0_2 = arith.constant 0 : index
    %c0_3 = arith.constant 0 : index
    %c0_4 = arith.constant 0 : index
    %9 = vector.load %arg3[%c0_2, %c0_3, %c0_4] : memref<1x1x64xi32, #tpu.memory_space<vmem>>, vector<1x1x64xi32>
    %10 = vector.shape_cast %9 : vector<1x1x64xi32> to vector<1x64xi32>
    %11 = vector.broadcast %10 : vector<1x64xi32> to vector<16x64xi32>
    %12 = arith.cmpi eq, %8, %11 : vector<16x64xi32>
    %13 = arith.extui %12 : vector<16x64xi1> to vector<16x64xi32>
    %14 = arith.sitofp %13 : vector<16x64xi32> to vector<16x64xf32>
    %15 = arith.truncf %14 : vector<16x64xf32> to vector<16x64xbf16>
    %c0_5 = arith.constant 0 : index
    %c0_6 = arith.constant 0 : index
    %c0_7 = arith.constant 0 : index
    %16 = vector.load %arg4[%c0_5, %c0_6, %c0_7] : memref<1x64x8xf32, #tpu.memory_space<vmem>>, vector<1x64x8xf32>
    %17 = vector.shape_cast %16 : vector<1x64x8xf32> to vector<64x8xf32>
    %c0_8 = arith.constant 0 : index
    %c0_9 = arith.constant 0 : index
    %18 = vector.load %arg5[%c0_8, %c0_9] : memref<200x128xf32, #tpu.memory_space<vmem>>, vector<8x48xf32>
    %cst = arith.constant dense<0.000000e+00> : vector<64x48xf32>
    %19 = tpu.matmul %17, %18, %cst {dimension_numbers = #tpu.dot_dimension_numbers<[1], [0], [0], [1], [0, 0, 1, 1], [], []>} : vector<64x8xf32>, vector<8x48xf32>, vector<64x48xf32> -> vector<64x48xf32>
    %20 = arith.negf %19 : vector<64x48xf32>
    %21 = math.exp %20 : vector<64x48xf32>
    %cst_10 = arith.constant 1.000000e+00 : f32
    %22 = vector.broadcast %cst_10 : f32 to vector<64x48xf32>
    %23 = arith.addf %22, %21 : vector<64x48xf32>
    %24 = arith.divf %22, %23 : vector<64x48xf32>
    %25 = arith.mulf %19, %24 : vector<64x48xf32>
    %c8 = arith.constant 8 : index
    %c0_11 = arith.constant 0 : index
    %26 = vector.load %arg5[%c8, %c0_11] : memref<200x128xf32, #tpu.memory_space<vmem>>, vector<48x72xf32>
    %cst_12 = arith.constant dense<0.000000e+00> : vector<64x72xf32>
    %27 = tpu.matmul %25, %26, %cst_12 {dimension_numbers = #tpu.dot_dimension_numbers<[1], [0], [0], [1], [0, 0, 1, 1], [], []>} : vector<64x48xf32>, vector<48x72xf32>, vector<64x72xf32> -> vector<64x72xf32>
    %c0_13 = arith.constant 0 : index
    %c0_14 = arith.constant 0 : index
    %c0_15 = arith.constant 0 : index
    %28 = vector.load %arg1[%c0_13, %c0_14, %c0_15] : memref<1x16x8xf32, #tpu.memory_space<vmem>>, vector<1x16x8xf32>
    %29 = vector.shape_cast %28 : vector<1x16x8xf32> to vector<16x8xf32>
    %c56 = arith.constant 56 : index
    %c0_16 = arith.constant 0 : index
    %30 = vector.load %arg5[%c56, %c0_16] : memref<200x128xf32, #tpu.memory_space<vmem>>, vector<8x40xf32>
    %c64 = arith.constant 64 : index
    %c0_17 = arith.constant 0 : index
    %31 = vector.load %arg5[%c64, %c0_17] : memref<200x128xf32, #tpu.memory_space<vmem>>, vector<8x32xf32>
    %cst_18 = arith.constant dense<0.000000e+00> : vector<16x40xf32>
    %32 = tpu.matmul %29, %30, %cst_18 {dimension_numbers = #tpu.dot_dimension_numbers<[1], [0], [0], [1], [0, 0, 1, 1], [], []>} : vector<16x8xf32>, vector<8x40xf32>, vector<16x40xf32> -> vector<16x40xf32>
    %33 = vector.extract_strided_slice %32 {offsets = [0, 0], sizes = [16, 8], strides = [1, 1]} : vector<16x40xf32> to vector<16x8xf32>
    %34 = vector.extract_strided_slice %32 {offsets = [0, 8], sizes = [16, 32], strides = [1, 1]} : vector<16x40xf32> to vector<16x32xf32>
    %35 = vector.extract_strided_slice %27 {offsets = [0, 0], sizes = [64, 8], strides = [1, 1]} : vector<64x72xf32> to vector<64x8xf32>
    %36 = arith.truncf %33 : vector<16x8xf32> to vector<16x8xbf16>
    %cst_19 = arith.constant dense<0.000000e+00> : vector<64x8xf32>
    %37 = tpu.matmul %7, %36, %cst_19 {dimension_numbers = #tpu.dot_dimension_numbers<[1], [0], [0], [1], [0, 0, 1, 1], [], []>} : vector<64x16xbf16>, vector<16x8xbf16>, vector<64x8xf32> -> vector<64x8xf32>
    %38 = arith.mulf %37, %35 : vector<64x8xf32>
    %39 = arith.truncf %38 : vector<64x8xf32> to vector<64x8xbf16>
    %cst_20 = arith.constant dense<0.000000e+00> : vector<16x8xf32>
    %40 = tpu.matmul %15, %39, %cst_20 {dimension_numbers = #tpu.dot_dimension_numbers<[1], [0], [0], [1], [0, 0, 1, 1], [], []>} : vector<16x64xbf16>, vector<64x8xbf16>, vector<16x8xf32> -> vector<16x8xf32>
    %cst_21 = arith.constant dense<0.000000e+00> : vector<16x32xf32>
    %41 = tpu.matmul %40, %31, %cst_21 {dimension_numbers = #tpu.dot_dimension_numbers<[1], [0], [0], [1], [0, 0, 1, 1], [], []>} : vector<16x8xf32>, vector<8x32xf32>, vector<16x32xf32> -> vector<16x32xf32>
    %42 = arith.addf %34, %41 : vector<16x32xf32>
    %43 = arith.negf %42 : vector<16x32xf32>
    %44 = math.exp %43 : vector<16x32xf32>
    %cst_22 = arith.constant 1.000000e+00 : f32
    %45 = vector.broadcast %cst_22 : f32 to vector<16x32xf32>
    %46 = arith.addf %45, %44 : vector<16x32xf32>
    %47 = arith.divf %45, %46 : vector<16x32xf32>
    %48 = arith.mulf %42, %47 : vector<16x32xf32>
    %c72 = arith.constant 72 : index
    %c0_23 = arith.constant 0 : index
    %49 = vector.load %arg5[%c72, %c0_23] : memref<200x128xf32, #tpu.memory_space<vmem>>, vector<32x64xf32>
    %c104 = arith.constant 104 : index
    %c0_24 = arith.constant 0 : index
    %50 = vector.load %arg5[%c104, %c0_24] : memref<200x128xf32, #tpu.memory_space<vmem>>, vector<32x32xf32>
    %cst_25 = arith.constant dense<0.000000e+00> : vector<16x64xf32>
    %51 = tpu.matmul %48, %49, %cst_25 {dimension_numbers = #tpu.dot_dimension_numbers<[1], [0], [0], [1], [0, 0, 1, 1], [], []>} : vector<16x32xf32>, vector<32x64xf32>, vector<16x64xf32> -> vector<16x64xf32>
    %52 = vector.extract_strided_slice %51 {offsets = [0, 0], sizes = [16, 32], strides = [1, 1]} : vector<16x64xf32> to vector<16x32xf32>
    %53 = vector.extract_strided_slice %51 {offsets = [0, 32], sizes = [16, 32], strides = [1, 1]} : vector<16x64xf32> to vector<16x32xf32>
    %54 = vector.extract_strided_slice %27 {offsets = [0, 8], sizes = [64, 32], strides = [1, 1]} : vector<64x72xf32> to vector<64x32xf32>
    %55 = arith.truncf %52 : vector<16x32xf32> to vector<16x32xbf16>
    %cst_26 = arith.constant dense<0.000000e+00> : vector<64x32xf32>
    %56 = tpu.matmul %7, %55, %cst_26 {dimension_numbers = #tpu.dot_dimension_numbers<[1], [0], [0], [1], [0, 0, 1, 1], [], []>} : vector<64x16xbf16>, vector<16x32xbf16>, vector<64x32xf32> -> vector<64x32xf32>
    %57 = arith.mulf %56, %54 : vector<64x32xf32>
    %58 = arith.truncf %57 : vector<64x32xf32> to vector<64x32xbf16>
    %cst_27 = arith.constant dense<0.000000e+00> : vector<16x32xf32>
    %59 = tpu.matmul %15, %58, %cst_27 {dimension_numbers = #tpu.dot_dimension_numbers<[1], [0], [0], [1], [0, 0, 1, 1], [], []>} : vector<16x64xbf16>, vector<64x32xbf16>, vector<16x32xf32> -> vector<16x32xf32>
    %cst_28 = arith.constant dense<0.000000e+00> : vector<16x32xf32>
    %60 = tpu.matmul %59, %50, %cst_28 {dimension_numbers = #tpu.dot_dimension_numbers<[1], [0], [0], [1], [0, 0, 1, 1], [], []>} : vector<16x32xf32>, vector<32x32xf32>, vector<16x32xf32> -> vector<16x32xf32>
    %61 = arith.addf %53, %60 : vector<16x32xf32>
    %62 = arith.negf %61 : vector<16x32xf32>
    %63 = math.exp %62 : vector<16x32xf32>
    %cst_29 = arith.constant 1.000000e+00 : f32
    %64 = vector.broadcast %cst_29 : f32 to vector<16x32xf32>
    %65 = arith.addf %64, %63 : vector<16x32xf32>
    %66 = arith.divf %64, %65 : vector<16x32xf32>
    %67 = arith.mulf %61, %66 : vector<16x32xf32>
    %c136 = arith.constant 136 : index
    %c0_30 = arith.constant 0 : index
    %68 = vector.load %arg5[%c136, %c0_30] : memref<200x128xf32, #tpu.memory_space<vmem>>, vector<32x40xf32>
    %c168 = arith.constant 168 : index
    %c0_31 = arith.constant 0 : index
    %69 = vector.load %arg5[%c168, %c0_31] : memref<200x128xf32, #tpu.memory_space<vmem>>, vector<32x8xf32>
    %cst_32 = arith.constant dense<0.000000e+00> : vector<16x40xf32>
    %70 = tpu.matmul %67, %68, %cst_32 {dimension_numbers = #tpu.dot_dimension_numbers<[1], [0], [0], [1], [0, 0, 1, 1], [], []>} : vector<16x32xf32>, vector<32x40xf32>, vector<16x40xf32> -> vector<16x40xf32>
    %71 = vector.extract_strided_slice %70 {offsets = [0, 0], sizes = [16, 32], strides = [1, 1]} : vector<16x40xf32> to vector<16x32xf32>
    %72 = vector.extract_strided_slice %70 {offsets = [0, 32], sizes = [16, 8], strides = [1, 1]} : vector<16x40xf32> to vector<16x8xf32>
    %73 = vector.extract_strided_slice %27 {offsets = [0, 40], sizes = [64, 32], strides = [1, 1]} : vector<64x72xf32> to vector<64x32xf32>
    %74 = arith.truncf %71 : vector<16x32xf32> to vector<16x32xbf16>
    %cst_33 = arith.constant dense<0.000000e+00> : vector<64x32xf32>
    %75 = tpu.matmul %7, %74, %cst_33 {dimension_numbers = #tpu.dot_dimension_numbers<[1], [0], [0], [1], [0, 0, 1, 1], [], []>} : vector<64x16xbf16>, vector<16x32xbf16>, vector<64x32xf32> -> vector<64x32xf32>
    %76 = arith.mulf %75, %73 : vector<64x32xf32>
    %77 = arith.truncf %76 : vector<64x32xf32> to vector<64x32xbf16>
    %cst_34 = arith.constant dense<0.000000e+00> : vector<16x32xf32>
    %78 = tpu.matmul %15, %77, %cst_34 {dimension_numbers = #tpu.dot_dimension_numbers<[1], [0], [0], [1], [0, 0, 1, 1], [], []>} : vector<16x64xbf16>, vector<64x32xbf16>, vector<16x32xf32> -> vector<16x32xf32>
    %cst_35 = arith.constant dense<0.000000e+00> : vector<16x8xf32>
    %79 = tpu.matmul %78, %69, %cst_35 {dimension_numbers = #tpu.dot_dimension_numbers<[1], [0], [0], [1], [0, 0, 1, 1], [], []>} : vector<16x32xf32>, vector<32x8xf32>, vector<16x8xf32> -> vector<16x8xf32>
    %80 = arith.addf %72, %79 : vector<16x8xf32>
    %c0_36 = arith.constant 0 : index
    %c0_37 = arith.constant 0 : index
    %c0_38 = arith.constant 0 : index
    %81 = vector.load %arg6[%c0_36, %c0_37, %c0_38] : memref<1x16x8xf32, #tpu.memory_space<vmem>>, vector<1x16x8xf32>
    %82 = vector.shape_cast %81 : vector<1x16x8xf32> to vector<16x8xf32>
    %83 = vector.shape_cast %80 : vector<16x8xf32> to vector<1x16x8xf32>
    tpu.vector_store %arg6[%c0_36, %c0_37, %c0_38], %83 {strides = array<i32>} : memref<1x16x8xf32, #tpu.memory_space<vmem>>, vector<1x16x8xf32>,
    return
  }
  func.func @transform_0(%arg0: i32) -> (i32, i32, i32) {
    %c0_i32 = arith.constant 0 : i32
    %c0_i32_0 = arith.constant 0 : i32
    %c0_i32_1 = arith.constant 0 : i32
    return %arg0, %c0_i32, %c0_i32_0 : i32, i32, i32
  }
  func.func @transform_1(%arg0: i32) -> (i32, i32, i32) {
    %c0_i32 = arith.constant 0 : i32
    %c0_i32_0 = arith.constant 0 : i32
    %c0_i32_1 = arith.constant 0 : i32
    return %arg0, %c0_i32, %c0_i32_0 : i32, i32, i32
  }
  func.func @transform_2(%arg0: i32) -> (i32, i32, i32) {
    %c0_i32 = arith.constant 0 : i32
    %c0_i32_0 = arith.constant 0 : i32
    %c0_i32_1 = arith.constant 0 : i32
    return %arg0, %c0_i32, %c0_i32_0 : i32, i32, i32
  }
  func.func @transform_3(%arg0: i32) -> (i32, i32, i32) {
    %c0_i32 = arith.constant 0 : i32
    %c0_i32_0 = arith.constant 0 : i32
    %c0_i32_1 = arith.constant 0 : i32
    return %arg0, %c0_i32, %c0_i32_0 : i32, i32, i32
  }
  func.func @transform_4(%arg0: i32) -> (i32, i32) {
    %c0_i32 = arith.constant 0 : i32
    %c0_i32_0 = arith.constant 0 : i32
    %c0_i32_1 = arith.constant 0 : i32
    return %c0_i32, %c0_i32_0 : i32, i32
  }
  func.func @transform_5(%arg0: i32) -> (i32, i32, i32) {
    %c0_i32 = arith.constant 0 : i32
    %c0_i32_0 = arith.constant 0 : i32
    %c0_i32_1 = arith.constant 0 : i32
    return %arg0, %c0_i32, %c0_i32_0 : i32, i32, i32
  }
}

</mosaic_0001>

<llo_original>
// kernel: tpu_custom_call.1
$region0: #{tpu_custom_call.1}
  #allocation0 [shape = 'u32[]', space=smem, size = 0x4, offset = 0x4, fixed_abs, tag = 'smem constant byte address 0x4 - core index']
  #allocation1 [shape = 'u32[72,128]{1,0:T(1,128)}', space=vmem, size = 0x9000, scoped, tag = 'internal scratch']
  %s0 = inlined_call_operand.vmem [shape: f32[4,16,8], index: 0, kind: input, shape index: {}]
  %s1 = inlined_call_operand.vmem [shape: s32[4,64,1], index: 1, kind: input, shape index: {}]
  %s2 = inlined_call_operand.vmem [shape: s32[4,1,64], index: 2, kind: input, shape index: {}]
  %s3 = inlined_call_operand.vmem [shape: f32[4,64,8], index: 3, kind: input, shape index: {}]
  %s4 = inlined_call_operand.vmem [shape: f32[200,128], index: 4, kind: input, shape index: {}]
  %s5 = inlined_call_operand.vmem [shape: f32[4,16,8], index: 5, kind: output, shape index: {}]
  %s6 = sld [smem:[#allocation0]]
  $region53: #{tpu_custom_call.1} parent=0
    _
  %s8 = ssub.s32 1, %s6
  %s9 = scalar_select 0, %s8, %s6
  loop: start=0, step=1, limit=6
  $region2: #{tpu_custom_call.1} parent=0 // loop_pre_header
    _
  $region3: #{tpu_custom_call.1} parent=0 // loop_header
    %s11 = sphi 0, %s15
    %p12 = scmp.ge.s32.totalorder %s11, 6
    %s21 = sphi 0, %s23
    %s24 = sphi 0, %s21
    %s25 = sphi 0, %s24
    %s41 = sphi 0, %s25
    %s47 = sphi 0, %s49
    %s50 = sphi 0, %s47
    %s51 = sphi 0, %s50
    %s67 = sphi 0, %s51
    %s73 = sphi 0, %s75
    %s76 = sphi 0, %s73
    %s77 = sphi 0, %s76
    %s93 = sphi 0, %s77
    %s99 = sphi 0, %s101
    %s102 = sphi 0, %s99
    %s103 = sphi 0, %s102
    %s119 = sphi 0, %s103
    %s123 = sphi 0, %s123
    %s125 = sphi 0, %s123
    %s126 = sphi 0, %s125
    %s140 = sphi 0, %s126
    %s146 = sphi 0, %s148
    %s149 = sphi 0, %s146
    %s150 = sphi 0, %s149
    %s166 = sphi 0, %s150
  $region4: #{tpu_custom_call.1} parent=0 // loop_header_branch
    %14 = sbr.rel (%p12) target = $region8
  $region5: #{tpu_custom_call.1} parent=0 // loop_body
    %s16 = ssub.s32 %s11, 1
    %s17 = ssub.s32 %s11, 2
    %s18 = sadd.s32 %s11, 1
    %s19 = ssub.s32 %s11, %s18
    %p20 = scmp.eq.s32.totalorder %s19, 0
    %s22 = sadd.s32 %s21, 1
    %s23 = scalar_select %p20, %s21, %s22
    %p26 = pneg %p20
    %p27 = scmp.eq.s32.totalorder %s11, 3
    %p28 = por %p26, %p27
    %p29 = scmp.ne.s32.totalorder %s21, %s24
    %p30 = scmp.eq.s32.totalorder %s11, 0
    %p31 = por %p29, %p30
    %p32 = scmp.ne.s32.totalorder %s21, %s24
    %p33 = scmp.eq.s32.totalorder %s16, 3
    %p34 = por %p32, %p33
    %p35 = scmp.ne.s32.totalorder %s24, %s25
    %p36 = scmp.eq.s32.totalorder %s16, 0
    %p37 = por %p35, %p36
    %p38 = scmp.ne.s32.totalorder %s24, %s25
    %p39 = scmp.eq.s32.totalorder %s17, 3
    %p40 = por %p38, %p39
    %p42 = scmp.ne.s32.totalorder %s25, %s41
    %p43 = scmp.eq.s32.totalorder %s17, 0
    %p44 = por %p42, %p43
    %s45 = ssub.s32 %s11, %s18
    %p46 = scmp.eq.s32.totalorder %s45, 0
    %s48 = sadd.s32 %s47, 1
    %s49 = scalar_select %p46, %s47, %s48
    %p52 = pneg %p46
    %p53 = scmp.eq.s32.totalorder %s11, 3
    %p54 = por %p52, %p53
    %p55 = scmp.ne.s32.totalorder %s47, %s50
    %p56 = scmp.eq.s32.totalorder %s11, 0
    %p57 = por %p55, %p56
    %p58 = scmp.ne.s32.totalorder %s47, %s50
    %p59 = scmp.eq.s32.totalorder %s16, 3
    %p60 = por %p58, %p59
    %p61 = scmp.ne.s32.totalorder %s50, %s51
    %p62 = scmp.eq.s32.totalorder %s16, 0
    %p63 = por %p61, %p62
    %p64 = scmp.ne.s32.totalorder %s50, %s51
    %p65 = scmp.eq.s32.totalorder %s17, 3
    %p66 = por %p64, %p65
    %p68 = scmp.ne.s32.totalorder %s51, %s67
    %p69 = scmp.eq.s32.totalorder %s17, 0
    %p70 = por %p68, %p69
    %s71 = ssub.s32 %s11, %s18
    %p72 = scmp.eq.s32.totalorder %s71, 0
    %s74 = sadd.s32 %s73, 1
    %s75 = scalar_select %p72, %s73, %s74
    %p78 = pneg %p72
    %p79 = scmp.eq.s32.totalorder %s11, 3
    %p80 = por %p78, %p79
    %p81 = scmp.ne.s32.totalorder %s73, %s76
    %p82 = scmp.eq.s32.totalorder %s11, 0
    %p83 = por %p81, %p82
    %p84 = scmp.ne.s32.totalorder %s73, %s76
    %p85 = scmp.eq.s32.totalorder %s16, 3
    %p86 = por %p84, %p85
    %p87 = scmp.ne.s32.totalorder %s76, %s77
    %p88 = scmp.eq.s32.totalorder %s16, 0
    %p89 = por %p87, %p88
    %p90 = scmp.ne.s32.totalorder %s76, %s77
    %p91 = scmp.eq.s32.totalorder %s17, 3
    %p92 = por %p90, %p91
    %p94 = scmp.ne.s32.totalorder %s77, %s93
    %p95 = scmp.eq.s32.totalorder %s17, 0
    %p96 = por %p94, %p95
    %s97 = ssub.s32 %s11, %s18
    %p98 = scmp.eq.s32.totalorder %s97, 0
    %s100 = sadd.s32 %s99, 1
    %s101 = scalar_select %p98, %s99, %s100
    %p104 = pneg %p98
    %p105 = scmp.eq.s32.totalorder %s11, 3
    %p106 = por %p104, %p105
    %p107 = scmp.ne.s32.totalorder %s99, %s102
    %p108 = scmp.eq.s32.totalorder %s11, 0
    %p109 = por %p107, %p108
    %p110 = scmp.ne.s32.totalorder %s99, %s102
    %p111 = scmp.eq.s32.totalorder %s16, 3
    %p112 = por %p110, %p111
    %p113 = scmp.ne.s32.totalorder %s102, %s103
    %p114 = scmp.eq.s32.totalorder %s16, 0
    %p115 = por %p113, %p114
    %p116 = scmp.ne.s32.totalorder %s102, %s103
    %p117 = scmp.eq.s32.totalorder %s17, 3
    %p118 = por %p116, %p117
    %p120 = scmp.ne.s32.totalorder %s103, %s119
    %p121 = scmp.eq.s32.totalorder %s17, 0
    %p122 = por %p120, %p121
    %s124 = sadd.s32 %s123, 1
    %p127 = scmp.eq.s32.totalorder %s11, 3
    %p128 = scmp.ne.s32.totalorder %s123, %s125
    %p129 = scmp.eq.s32.totalorder %s11, 0
    %p130 = por %p128, %p129
    %p131 = scmp.ne.s32.totalorder %s123, %s125
    %p132 = scmp.eq.s32.totalorder %s16, 3
    %p133 = por %p131, %p132
    %p134 = scmp.ne.s32.totalorder %s125, %s126
    %p135 = scmp.eq.s32.totalorder %s16, 0
    %p136 = por %p134, %p135
    %p137 = scmp.ne.s32.totalorder %s125, %s126
    %p138 = scmp.eq.s32.totalorder %s17, 3
    %p139 = por %p137, %p138
    %p141 = scmp.ne.s32.totalorder %s126, %s140
    %p142 = scmp.eq.s32.totalorder %s17, 0
    %p143 = por %p141, %p142
    %s144 = ssub.s32 %s11, %s18
    %p145 = scmp.eq.s32.totalorder %s144, 0
    %s147 = sadd.s32 %s146, 1
    %s148 = scalar_select %p145, %s146, %s147
    %p151 = pneg %p145
    %p152 = scmp.eq.s32.totalorder %s11, 3
    %p153 = por %p151, %p152
    %p154 = scmp.ne.s32.totalorder %s146, %s149
    %p155 = scmp.eq.s32.totalorder %s11, 0
    %p156 = por %p154, %p155
    %p157 = scmp.ne.s32.totalorder %s146, %s149
    %p158 = scmp.eq.s32.totalorder %s16, 3
    %p159 = por %p157, %p158
    %p160 = scmp.ne.s32.totalorder %s149, %s150
    %p161 = scmp.eq.s32.totalorder %s16, 0
    %p162 = por %p160, %p161
    %p163 = scmp.ne.s32.totalorder %s149, %s150
    %p164 = scmp.eq.s32.totalorder %s17, 3
    %p165 = por %p163, %p164
    %p167 = scmp.ne.s32.totalorder %s150, %s166
    %p168 = scmp.eq.s32.totalorder %s17, 0
    %p169 = por %p167, %p168
    %p170 = scmp.le.s32.totalorder 1, %s11
    %p171 = scmp.lt.s32.totalorder %s11, 5
    %p172 = pnand %p170, %p171
    %p173 = pneg %p172
    // Predicated region
    $region9: #{tpu_custom_call.1} parent=5 // pred_check
      _
    $region10: #{tpu_custom_call.1} parent=5 // pred_check_branch
      %175 = sbr.rel (%p172) target = $region12
    $region11: #{tpu_custom_call.1} parent=5 // pred_region
      %s176 = ssub.s32 %s11, 1
      // Predicated region
      $region13: #{tpu_custom_call.1} parent=11 // pred_check
        %p177 = pneg %p136
      $region14: #{tpu_custom_call.1} parent=11 // pred_check_branch
        %179 = sbr.rel (%p177) target = $region16
      $region15: #{tpu_custom_call.1} parent=11 // pred_region
        _
      $region16: #{tpu_custom_call.1} parent=11 // pred_fallthru
        _
    $region12: #{tpu_custom_call.1} parent=5 // pred_fallthru
      _
    %p180 = scmp.lt.s32.totalorder %s11, 4
    // Predicated region
    $region17: #{tpu_custom_call.1} parent=5 // pred_check
      %p181 = pneg %p180
    $region18: #{tpu_custom_call.1} parent=5 // pred_check_branch
      %183 = sbr.rel (%p181) target = $region20
    $region19: #{tpu_custom_call.1} parent=5 // pred_region
      // Predicated region
      $region21: #{tpu_custom_call.1} parent=19 // pred_check
        %p184 = pneg %p31
      $region22: #{tpu_custom_call.1} parent=19 // pred_check_branch
        %186 = sbr.rel (%p184) target = $region24
      $region23: #{tpu_custom_call.1} parent=19 // pred_region
        %p187 = scmp.lt.s32.totalorder %s11, 3
        %s188 = scalar_select %p187, %s11, 3
        %s189 = smul.addr %s188, 2
        %s190 = smul.addr %s189, 8
        %s191 = scalar_lea.vmem %s0, %s190
      $region24: #{tpu_custom_call.1} parent=19 // pred_fallthru
        _
      // Predicated region
      $region25: #{tpu_custom_call.1} parent=19 // pred_check
        %p192 = pneg %p57
      $region26: #{tpu_custom_call.1} parent=19 // pred_check_branch
        %194 = sbr.rel (%p192) target = $region28
      $region27: #{tpu_custom_call.1} parent=19 // pred_region
        %p195 = scmp.lt.s32.totalorder %s11, 3
        %s196 = scalar_select %p195, %s11, 3
        %s197 = smul.addr %s196, 8
        %s198 = smul.addr %s197, 8
        %s199 = scalar_lea.vmem %s1, %s198
      $region28: #{tpu_custom_call.1} parent=19 // pred_fallthru
        _
      // Predicated region
      $region29: #{tpu_custom_call.1} parent=19 // pred_check
        %p200 = pneg %p83
      $region30: #{tpu_custom_call.1} parent=19 // pred_check_branch
        %202 = sbr.rel (%p200) target = $region32
      $region31: #{tpu_custom_call.1} parent=19 // pred_region
        %p203 = scmp.lt.s32.totalorder %s11, 3
        %s204 = scalar_select %p203, %s11, 3
        %s205 = scalar_lea.vmem %s2, %s204
      $region32: #{tpu_custom_call.1} parent=19 // pred_fallthru
        _
      // Predicated region
      $region33: #{tpu_custom_call.1} parent=19 // pred_check
        %p206 = pneg %p109
      $region34: #{tpu_custom_call.1} parent=19 // pred_check_branch
        %208 = sbr.rel (%p206) target = $region36
      $region35: #{tpu_custom_call.1} parent=19 // pred_region
        %p209 = scmp.lt.s32.totalorder %s11, 3
        %s210 = scalar_select %p209, %s11, 3
        %s211 = smul.addr %s210, 8
        %s212 = smul.addr %s211, 8
        %s213 = scalar_lea.vmem %s3, %s212
      $region36: #{tpu_custom_call.1} parent=19 // pred_fallthru
        _
    $region20: #{tpu_custom_call.1} parent=5 // pred_fallthru
      _
    %p214 = scmp.le.s32.totalorder 1, %s11
    %p215 = scmp.lt.s32.totalorder %s11, 5
    %p216 = pnand %p214, %p215
    %p217 = pneg %p216
    // Predicated region
    $region37: #{tpu_custom_call.1} parent=5 // pred_check
      _
    $region38: #{tpu_custom_call.1} parent=5 // pred_check_branch
      %219 = sbr.rel (%p216) target = $region40
    $region39: #{tpu_custom_call.1} parent=5 // pred_region
      %s220 = ssub.s32 %s11, 1
      %p221 = scmp.lt.s32.totalorder %s16, 3
      %s222 = scalar_select %p221, %s16, 3
      %s223 = smul.addr %s222, 2
      %s224 = smul.addr %s223, 8
      %s225 = scalar_lea.vmem %s0, %s224
      %p226 = pneg %p37
      %p227 = pneg %p34
      %p228 = scmp.lt.s32.totalorder %s16, 3
      %s229 = scalar_select %p228, %s16, 3
      %s230 = smul.addr %s229, 8
      %s231 = smul.addr %s230, 8
      %s232 = scalar_lea.vmem %s1, %s231
      %p233 = pneg %p63
      %p234 = pneg %p60
      %p235 = scmp.lt.s32.totalorder %s16, 3
      %s236 = scalar_select %p235, %s16, 3
      %s237 = scalar_lea.vmem %s2, %s236
      %p238 = pneg %p89
      %p239 = pneg %p86
      %p240 = scmp.lt.s32.totalorder %s16, 3
      %s241 = scalar_select %p240, %s16, 3
      %s242 = smul.addr %s241, 8
      %s243 = smul.addr %s242, 8
      %s244 = scalar_lea.vmem %s3, %s243
      %p245 = pneg %p115
      %p246 = pneg %p112
      %p247 = pneg %p136
      %p248 = pneg %p133
      %p249 = pneg %p162
      %p250 = pneg %p159
      %p251 = scmp.lt.s32.totalorder %s16, 3
      %s252 = scalar_select %p251, %s16, 3
      %s253 = smul.addr %s252, 2
      %s254 = smul.addr %s253, 8
      %s255 = scalar_lea.vmem %s5, %s254
      %p256 = scmp.lt.s32.totalorder %s16, 3
      %s257 = scalar_select %p256, %s16, 3
      %s258 = smul.addr %s257, 2
      %s259 = smul.addr %s258, 8
      %s260 = scalar_lea.vmem %s0, %s259
      %p261 = scmp.lt.s32.totalorder %s16, 3
      %s262 = scalar_select %p261, %s16, 3
      %s263 = smul.addr %s262, 8
      %s264 = smul.addr %s263, 8
      %s265 = scalar_lea.vmem %s1, %s264
      %p266 = scmp.lt.s32.totalorder %s16, 3
      %s267 = scalar_select %p266, %s16, 3
      %s268 = scalar_lea.vmem %s2, %s267
      %p269 = scmp.lt.s32.totalorder %s16, 3
      %s270 = scalar_select %p269, %s16, 3
      %s271 = smul.addr %s270, 8
      %s272 = smul.addr %s271, 8
      %s273 = scalar_lea.vmem %s3, %s272
      %p274 = scmp.lt.s32.totalorder %s16, 3
      %s275 = scalar_select %p274, %s16, 3
      %s276 = smul.addr %s275, 2
      %s277 = smul.addr %s276, 8
      %s278 = scalar_lea.vmem %s5, %s277
      %v280 = vlaneseq
      %v281 = vand.u32 %v280, 127
      %v282 = vld [vmem:[%s265] sm:$0xff]
      %v283 = vld [vmem:[%s265 + $0x8] sm:$0xff]
      %v284 = vld [vmem:[%s265 + $0x10] sm:$0xff]
      %v285 = vld [vmem:[%s265 + $0x18] sm:$0xff]
      %v286 = vld [vmem:[%s265 + $0x20] sm:$0xff]
      %v287 = vld [vmem:[%s265 + $0x28] sm:$0xff]
      %v288 = vld [vmem:[%s265 + $0x30] sm:$0xff]
      %v289 = vld [vmem:[%s265 + $0x38] sm:$0xff]
      %290 = vset.pattern.permute.xlu0 0
      %291 = vperm.xlu0 %290, %v282
      %v292 = vpop.permute.xlu0 %291
      %293 = vset.pattern.permute.xlu0 0
      %294 = vperm.xlu0 %293, %v283
      %v295 = vpop.permute.xlu0 %294
      %296 = vset.pattern.permute.xlu0 0
      %297 = vperm.xlu0 %296, %v284
      %v298 = vpop.permute.xlu0 %297
      %299 = vset.pattern.permute.xlu0 0
      %300 = vperm.xlu0 %299, %v285
      %v301 = vpop.permute.xlu0 %300
      %302 = vset.pattern.permute.xlu0 0
      %303 = vperm.xlu0 %302, %v286
      %v304 = vpop.permute.xlu0 %303
      %305 = vset.pattern.permute.xlu0 0
      %306 = vperm.xlu0 %305, %v287
      %v307 = vpop.permute.xlu0 %306
      %308 = vset.pattern.permute.xlu0 0
      %309 = vperm.xlu0 %308, %v288
      %v310 = vpop.permute.xlu0 %309
      %311 = vset.pattern.permute.xlu0 0
      %312 = vperm.xlu0 %311, %v289
      %v313 = vpop.permute.xlu0 %312
      %vm314 = vcmp.eq.s32.totalorder %v281, %v292
      %vm315 = vcmp.eq.s32.totalorder %v281, %v295
      %vm316 = vcmp.eq.s32.totalorder %v281, %v298
      %vm317 = vcmp.eq.s32.totalorder %v281, %v301
      %vm318 = vcmp.eq.s32.totalorder %v281, %v304
      %vm319 = vcmp.eq.s32.totalorder %v281, %v307
      %vm320 = vcmp.eq.s32.totalorder %v281, %v310
      %vm321 = vcmp.eq.s32.totalorder %v281, %v313
      %v322 = vsel %vm314, 1, 0
      %v323 = vsel %vm315, 1, 0
      %v324 = vsel %vm316, 1, 0
      %v325 = vsel %vm317, 1, 0
      %v326 = vsel %vm318, 1, 0
      %v327 = vsel %vm319, 1, 0
      %v328 = vsel %vm320, 1, 0
      %v329 = vsel %vm321, 1, 0
      %v330 = vcvt.s32.f32 %v322
      %v331 = vcvt.s32.f32 %v323
      %v332 = vcvt.s32.f32 %v324
      %v333 = vcvt.s32.f32 %v325
      %v334 = vcvt.s32.f32 %v326
      %v335 = vcvt.s32.f32 %v327
      %v336 = vcvt.s32.f32 %v328
      %v337 = vcvt.s32.f32 %v329
      %v338 = vpack.c.bf16 %v331, %v330
      %v339 = vpack.c.bf16 %v333, %v332
      %v340 = vpack.c.bf16 %v335, %v334
      %v341 = vpack.c.bf16 %v337, %v336
      %v342 = vlaneseq
      %v343 = vshrl.u32 %v342, 7
      %v344 = vadd.s32 %v343, 8
      %v345 = vld [vmem:[%s268] sm:$0x1]
      %v346 = vperm.slane %v345, 0
      %vm347 = vcmp.eq.s32.totalorder %v343, %v346
      %vm348 = vcmp.eq.s32.totalorder %v344, %v346
      %v349 = vsel %vm347, 1, 0
      %v350 = vsel %vm348, 1, 0
      %v351 = vcvt.s32.f32 %v349
      %v352 = vcvt.s32.f32 %v350
      %v353 = vpack.c.bf16 %v352, %v351
      %v354 = vld [vmem:[%s273] sm:$0xff]
      %v355 = vld [vmem:[%s273 + $0x8] sm:$0xff]
      %v356 = vld [vmem:[%s273 + $0x10] sm:$0xff]
      %v357 = vld [vmem:[%s273 + $0x18] sm:$0xff]
      %v358 = vld [vmem:[%s273 + $0x20] sm:$0xff]
      %v359 = vld [vmem:[%s273 + $0x28] sm:$0xff]
      %v360 = vld [vmem:[%s273 + $0x30] sm:$0xff]
      %v361 = vld [vmem:[%s273 + $0x38] sm:$0xff]
      %v362 = vld [vmem:[%s4] sm:$0xff]
      %vm363 = vcmask 64512
      %v365 = vsel %vm363, %v354, 0
      %v368 = vsel %vm363, %v355, 0
      %v371 = vsel %vm363, %v356, 0
      %v374 = vsel %vm363, %v357, 0
      %v377 = vsel %vm363, %v358, 0
      %v380 = vsel %vm363, %v359, 0
      %v383 = vsel %vm363, %v360, 0
      %v386 = vsel %vm363, %v361, 0
      %388 = vmatpush.msra.mxu0 0.0
      %389 = vmatpush.msra.mxu0 0.0
      %390 = vmatpush.msra.mxu0 0.0
      %391 = vmatpush.msra.mxu0 0.0
      %392 = vmatpush.msra.mxu0 0.0
      %393 = vmatpush.msra.mxu0 0.0
      %394 = vmatpush.msra.mxu0 0.0
      %395 = vmatpush.msra.mxu0 0.0
      %396 = vmatpush.msra.mxu0 0.0
      %397 = vmatpush.msra.mxu0 0.0
      %398 = vmatpush.msra.mxu0 0.0
      %399 = vmatpush.msra.mxu0 0.0
      %400 = vmatpush.msra.mxu0 0.0
      %401 = vmatpush.msra.mxu0 0.0
      %402 = vmatpush.msra.mxu0 0.0
      %403 = vmatpush.msra.mxu0 %v362
      %404 = vmatmul.f32.gmra.mxu0 %v365
      %v405 = vpop.f32.mrf.mxu0
      %v406 = vadd.f32 0.0, %v405
      %407 = vmatmul.f32.gmra.mxu0 %v368
      %v408 = vpop.f32.mrf.mxu0
      %v409 = vadd.f32 0.0, %v408
      %410 = vmatmul.f32.gmra.mxu0 %v371
      %v411 = vpop.f32.mrf.mxu0
      %v412 = vadd.f32 0.0, %v411
      %413 = vmatmul.f32.gmra.mxu0 %v374
      %v414 = vpop.f32.mrf.mxu0
      %v415 = vadd.f32 0.0, %v414
      %416 = vmatmul.f32.gmra.mxu0 %v377
      %v417 = vpop.f32.mrf.mxu0
      %v418 = vadd.f32 0.0, %v417
      %419 = vmatmul.f32.gmra.mxu0 %v380
      %v420 = vpop.f32.mrf.mxu0
      %v421 = vadd.f32 0.0, %v420
      %422 = vmatmul.f32.gmra.mxu0 %v383
      %v423 = vpop.f32.mrf.mxu0
      %v424 = vadd.f32 0.0, %v423
      %425 = vmatmul.f32.gmra.mxu0 %v386
      %v426 = vpop.f32.mrf.mxu0
      %v427 = vadd.f32 0.0, %v426
      %428 = vdwg.mxu0
      %v429 = vxor.u32 %v406, 2147483648
      %v430 = vxor.u32 %v409, 2147483648
      %v431 = vxor.u32 %v412, 2147483648
      %v432 = vxor.u32 %v415, 2147483648
      %v433 = vxor.u32 %v418, 2147483648
      %v434 = vxor.u32 %v421, 2147483648
      %v435 = vxor.u32 %v424, 2147483648
      %v436 = vxor.u32 %v427, 2147483648
      %v437 = vmul.f32 %v429, 1.442695
      %v438 = vpow.pop %v437
      %v439 = vmul.f32 %v430, 1.442695
      %v440 = vpow.pop %v439
      %v441 = vmul.f32 %v431, 1.442695
      %v442 = vpow.pop %v441
      %v443 = vmul.f32 %v432, 1.442695
      %v444 = vpow.pop %v443
      %v445 = vmul.f32 %v433, 1.442695
      %v446 = vpow.pop %v445
      %v447 = vmul.f32 %v434, 1.442695
      %v448 = vpow.pop %v447
      %v449 = vmul.f32 %v435, 1.442695
      %v450 = vpow.pop %v449
      %v451 = vmul.f32 %v436, 1.442695
      %v452 = vpow.pop %v451
      %v453 = vadd.f32 %v438, 1.0
      %v454 = vadd.f32 %v440, 1.0
      %v455 = vadd.f32 %v442, 1.0
      %v456 = vadd.f32 %v444, 1.0
      %v457 = vadd.f32 %v446, 1.0
      %v458 = vadd.f32 %v448, 1.0
      %v459 = vadd.f32 %v450, 1.0
      %v460 = vadd.f32 %v452, 1.0
      %v461 = vrcp.pop %v453
      %v462 = vmul.f32 %v453, %v461
      %v463 = vsub.f32 1.0, %v462
      %v464 = vmul.f32 %v461, %v463
      %v465 = vadd.f32 %v461, %v464
      %vm466 = vweird.f32 %v453
      %vm467 = vweird.f32 %v461
      %vm468 = vmor %vm466, %vm467
      %v469 = vsel %vm468, %v461, %v465
      %v470 = vand.u32 2147483647, %v453
      %vm471 = vcmp.eq.f32.partialorder %v470, 8.507059e+37
      %v472 = vand.u32 %v453, 2147483648
      %v473 = vor.u32 1.1754944e-38, %v472
      %v474 = vsel %vm471, %v473, %v469
      %v475 = vmul.f32 1.0, %v474
      %v476 = vrcp.pop %v454
      %v477 = vmul.f32 %v454, %v476
      %v478 = vsub.f32 1.0, %v477
      %v479 = vmul.f32 %v476, %v478
      %v480 = vadd.f32 %v476, %v479
      %vm481 = vweird.f32 %v454
      %vm482 = vweird.f32 %v476
      %vm483 = vmor %vm481, %vm482
      %v484 = vsel %vm483, %v476, %v480
      %v485 = vand.u32 2147483647, %v454
      %vm486 = vcmp.eq.f32.partialorder %v485, 8.507059e+37
      %v487 = vand.u32 %v454, 2147483648
      %v488 = vor.u32 1.1754944e-38, %v487
      %v489 = vsel %vm486, %v488, %v484
      %v490 = vmul.f32 1.0, %v489
      %v491 = vrcp.pop %v455
      %v492 = vmul.f32 %v455, %v491
      %v493 = vsub.f32 1.0, %v492
      %v494 = vmul.f32 %v491, %v493
      %v495 = vadd.f32 %v491, %v494
      %vm496 = vweird.f32 %v455
      %vm497 = vweird.f32 %v491
      %vm498 = vmor %vm496, %vm497
      %v499 = vsel %vm498, %v491, %v495
      %v500 = vand.u32 2147483647, %v455
      %vm501 = vcmp.eq.f32.partialorder %v500, 8.507059e+37
      %v502 = vand.u32 %v455, 2147483648
      %v503 = vor.u32 1.1754944e-38, %v502
      %v504 = vsel %vm501, %v503, %v499
      %v505 = vmul.f32 1.0, %v504
      %v506 = vrcp.pop %v456
      %v507 = vmul.f32 %v456, %v506
      %v508 = vsub.f32 1.0, %v507
      %v509 = vmul.f32 %v506, %v508
      %v510 = vadd.f32 %v506, %v509
      %vm511 = vweird.f32 %v456
      %vm512 = vweird.f32 %v506
      %vm513 = vmor %vm511, %vm512
      %v514 = vsel %vm513, %v506, %v510
      %v515 = vand.u32 2147483647, %v456
      %vm516 = vcmp.eq.f32.partialorder %v515, 8.507059e+37
      %v517 = vand.u32 %v456, 2147483648
      %v518 = vor.u32 1.1754944e-38, %v517
      %v519 = vsel %vm516, %v518, %v514
      %v520 = vmul.f32 1.0, %v519
      %v521 = vrcp.pop %v457
      %v522 = vmul.f32 %v457, %v521
      %v523 = vsub.f32 1.0, %v522
      %v524 = vmul.f32 %v521, %v523
      %v525 = vadd.f32 %v521, %v524
      %vm526 = vweird.f32 %v457
      %vm527 = vweird.f32 %v521
      %vm528 = vmor %vm526, %vm527
      %v529 = vsel %vm528, %v521, %v525
      %v530 = vand.u32 2147483647, %v457
      %vm531 = vcmp.eq.f32.partialorder %v530, 8.507059e+37
      %v532 = vand.u32 %v457, 2147483648
      %v533 = vor.u32 1.1754944e-38, %v532
      %v534 = vsel %vm531, %v533, %v529
      %v535 = vmul.f32 1.0, %v534
      %v536 = vrcp.pop %v458
      %v537 = vmul.f32 %v458, %v536
      %v538 = vsub.f32 1.0, %v537
      %v539 = vmul.f32 %v536, %v538
      %v540 = vadd.f32 %v536, %v539
      %vm541 = vweird.f32 %v458
      %vm542 = vweird.f32 %v536
      %vm543 = vmor %vm541, %vm542
      %v544 = vsel %vm543, %v536, %v540
      %v545 = vand.u32 2147483647, %v458
      %vm546 = vcmp.eq.f32.partialorder %v545, 8.507059e+37
      %v547 = vand.u32 %v458, 2147483648
      %v548 = vor.u32 1.1754944e-38, %v547
      %v549 = vsel %vm546, %v548, %v544
      %v550 = vmul.f32 1.0, %v549
      %v551 = vrcp.pop %v459
      %v552 = vmul.f32 %v459, %v551
      %v553 = vsub.f32 1.0, %v552
      %v554 = vmul.f32 %v551, %v553
      %v555 = vadd.f32 %v551, %v554
      %vm556 = vweird.f32 %v459
      %vm557 = vweird.f32 %v551
      %vm558 = vmor %vm556, %vm557
      %v559 = vsel %vm558, %v551, %v555
      %v560 = vand.u32 2147483647, %v459
      %vm561 = vcmp.eq.f32.partialorder %v560, 8.507059e+37
      %v562 = vand.u32 %v459, 2147483648
      %v563 = vor.u32 1.1754944e-38, %v562
      %v564 = vsel %vm561, %v563, %v559
      %v565 = vmul.f32 1.0, %v564
      %v566 = vrcp.pop %v460
      %v567 = vmul.f32 %v460, %v566
      %v568 = vsub.f32 1.0, %v567
      %v569 = vmul.f32 %v566, %v568
      %v570 = vadd.f32 %v566, %v569
      %vm571 = vweird.f32 %v460
      %vm572 = vweird.f32 %v566
      %vm573 = vmor %vm571, %vm572
      %v574 = vsel %vm573, %v566, %v570
      %v575 = vand.u32 2147483647, %v460
      %vm576 = vcmp.eq.f32.partialorder %v575, 8.507059e+37
      %v577 = vand.u32 %v460, 2147483648
      %v578 = vor.u32 1.1754944e-38, %v577
      %v579 = vsel %vm576, %v578, %v574
      %v580 = vmul.f32 1.0, %v579
      %v581 = vmul.f32 %v406, %v475
      %v582 = vmul.f32 %v409, %v490
      %v583 = vmul.f32 %v412, %v505
      %v584 = vmul.f32 %v415, %v520
      %v585 = vmul.f32 %v418, %v535
      %v586 = vmul.f32 %v421, %v550
      %v587 = vmul.f32 %v424, %v565
      %v588 = vmul.f32 %v427, %v580
      %v589 = vld [vmem:[%s4 + $0x8] sm:$0xff]
      %v590 = vld [vmem:[%s4 + $0x10] sm:$0xff]
      %v591 = vld [vmem:[%s4 + $0x18] sm:$0xff]
      %v592 = vld [vmem:[%s4 + $0x20] sm:$0xff]
      %v593 = vld [vmem:[%s4 + $0x28] sm:$0xff]
      %v594 = vld [vmem:[%s4 + $0x30] sm:$0xff]
      %vm595 = vcmask 392192
      %v597 = vsel %vm595, %v581, 0
      %v600 = vsel %vm595, %v582, 0
      %v603 = vsel %vm595, %v583, 0
      %v606 = vsel %vm595, %v584, 0
      %v609 = vsel %vm595, %v585, 0
      %v612 = vsel %vm595, %v586, 0
      %v615 = vsel %vm595, %v587, 0
      %v618 = vsel %vm595, %v588, 0
      %620 = vmatpush.msra.mxu0 0.0
      %621 = vmatpush.msra.mxu0 0.0
      %622 = vmatpush.msra.mxu0 0.0
      %623 = vmatpush.msra.mxu0 0.0
      %624 = vmatpush.msra.mxu0 0.0
      %625 = vmatpush.msra.mxu0 0.0
      %626 = vmatpush.msra.mxu0 0.0
      %627 = vmatpush.msra.mxu0 0.0
      %628 = vmatpush.msra.mxu0 0.0
      %629 = vmatpush.msra.mxu0 0.0
      %630 = vmatpush.msra.mxu0 %v594
      %631 = vmatpush.msra.mxu0 %v593
      %632 = vmatpush.msra.mxu0 %v592
      %633 = vmatpush.msra.mxu0 %v591
      %634 = vmatpush.msra.mxu0 %v590
      %635 = vmatpush.msra.mxu0 %v589
      %636 = vmatmul.f32.gmra.mxu0 %v597
      %v637 = vpop.f32.mrf.mxu0
      %v638 = vadd.f32 0.0, %v637
      %639 = vmatmul.f32.gmra.mxu0 %v600
      %v640 = vpop.f32.mrf.mxu0
      %v641 = vadd.f32 0.0, %v640
      %642 = vmatmul.f32.gmra.mxu0 %v603
      %v643 = vpop.f32.mrf.mxu0
      %v644 = vadd.f32 0.0, %v643
      %645 = vmatmul.f32.gmra.mxu0 %v606
      %v646 = vpop.f32.mrf.mxu0
      %v647 = vadd.f32 0.0, %v646
      %648 = vmatmul.f32.gmra.mxu0 %v609
      %v649 = vpop.f32.mrf.mxu0
      %v650 = vadd.f32 0.0, %v649
      %651 = vmatmul.f32.gmra.mxu0 %v612
      %v652 = vpop.f32.mrf.mxu0
      %v653 = vadd.f32 0.0, %v652
      %654 = vmatmul.f32.gmra.mxu0 %v615
      %v655 = vpop.f32.mrf.mxu0
      %v656 = vadd.f32 0.0, %v655
      %657 = vmatmul.f32.gmra.mxu0 %v618
      %v658 = vpop.f32.mrf.mxu0
      %v659 = vadd.f32 0.0, %v658
      %660 = vdwg.mxu0
      %v661 = vld [vmem:[%s260] sm:$0xff]
      %v662 = vld [vmem:[%s260 + $0x8] sm:$0xff]
      %v663 = vld [vmem:[%s4 + $0x38] sm:$0xff]
      %v664 = vld [vmem:[%s4 + $0x40] sm:$0xff]
      %v666 = vsel %vm363, %v661, 0
      %v669 = vsel %vm363, %v662, 0
      %671 = vmatpush.msra.mxu0 0.0
      %672 = vmatpush.msra.mxu0 0.0
      %673 = vmatpush.msra.mxu0 0.0
      %674 = vmatpush.msra.mxu0 0.0
      %675 = vmatpush.msra.mxu0 0.0
      %676 = vmatpush.msra.mxu0 0.0
      %677 = vmatpush.msra.mxu0 0.0
      %678 = vmatpush.msra.mxu0 0.0
      %679 = vmatpush.msra.mxu0 0.0
      %680 = vmatpush.msra.mxu0 0.0
      %681 = vmatpush.msra.mxu0 0.0
      %682 = vmatpush.msra.mxu0 0.0
      %683 = vmatpush.msra.mxu0 0.0
      %684 = vmatpush.msra.mxu0 0.0
      %685 = vmatpush.msra.mxu0 0.0
      %686 = vmatpush.msra.mxu0 %v663
      %687 = vmatmul.f32.gmra.mxu0 %v666
      %v688 = vpop.f32.mrf.mxu0
      %v689 = vadd.f32 0.0, %v688
      %690 = vmatmul.f32.gmra.mxu0 %v669
      %v691 = vpop.f32.mrf.mxu0
      %v692 = vadd.f32 0.0, %v691
      %693 = vdwg.mxu0
      %v694 = vpack.c.bf16 %v692, %v689
      %vm695 = vcmask 130048
      %v697 = vsel %vm695, %v338, 0
      %v700 = vsel %vm695, %v339, 0
      %v703 = vsel %vm695, %v340, 0
      %v706 = vsel %vm695, %v341, 0
      %708 = vmatpush.bf16.msra.mxu0 0
      %709 = vmatpush.bf16.msra.mxu0 0
      %710 = vmatpush.bf16.msra.mxu0 0
      %711 = vmatpush.bf16.msra.mxu0 0
      %712 = vmatpush.bf16.msra.mxu0 0
      %713 = vmatpush.bf16.msra.mxu0 0
      %714 = vmatpush.bf16.msra.mxu0 0
      %715 = vmatpush.bf16.msra.mxu0 %v694
      %716 = vmatmul.bf16.gmra.mxu0 %v697
      %v717 = vpop.f32.mrf.mxu0
      %v718 = vadd.f32 0.0, %v717
      %v719 = vpop.f32.mrf.mxu0
      %v720 = vadd.f32 0.0, %v719
      %721 = vmatmul.bf16.gmra.mxu0 %v700
      %v722 = vpop.f32.mrf.mxu0
      %v723 = vadd.f32 0.0, %v722
      %v724 = vpop.f32.mrf.mxu0
      %v725 = vadd.f32 0.0, %v724
      %726 = vmatmul.bf16.gmra.mxu0 %v703
      %v727 = vpop.f32.mrf.mxu0
      %v728 = vadd.f32 0.0, %v727
      %v729 = vpop.f32.mrf.mxu0
      %v730 = vadd.f32 0.0, %v729
      %731 = vmatmul.bf16.gmra.mxu0 %v706
      %v732 = vpop.f32.mrf.mxu0
      %v733 = vadd.f32 0.0, %v732
      %v734 = vpop.f32.mrf.mxu0
      %v735 = vadd.f32 0.0, %v734
      %736 = vdwg.mxu0
      %v737 = vmul.f32 %v718, %v638
      %v738 = vmul.f32 %v720, %v641
      %v739 = vmul.f32 %v723, %v644
      %v740 = vmul.f32 %v725, %v647
      %v741 = vmul.f32 %v728, %v650
      %v742 = vmul.f32 %v730, %v653
      %v743 = vmul.f32 %v733, %v656
      %v744 = vmul.f32 %v735, %v659
      %v745 = vpack.c.bf16 %v738, %v737
      %v746 = vpack.c.bf16 %v740, %v739
      %v747 = vpack.c.bf16 %v742, %v741
      %v748 = vpack.c.bf16 %v744, %v743
      %vm749 = vcmask 523264
      %v751 = vsel %vm749, %v353, 0
      %753 = vmatpush.bf16.msra.mxu0 0
      %754 = vmatpush.bf16.msra.mxu0 0
      %755 = vmatpush.bf16.msra.mxu0 0
      %756 = vmatpush.bf16.msra.mxu0 0
      %757 = vmatpush.bf16.msra.mxu0 %v748
      %758 = vmatpush.bf16.msra.mxu0 %v747
      %759 = vmatpush.bf16.msra.mxu0 %v746
      %760 = vmatpush.bf16.msra.mxu0 %v745
      %761 = vmatmul.bf16.gmra.mxu0 %v751
      %v762 = vpop.f32.mrf.mxu0
      %v763 = vadd.f32 0.0, %v762
      %v764 = vpop.f32.mrf.mxu0
      %v765 = vadd.f32 0.0, %v764
      %766 = vdwg.mxu0
      %v768 = vsel %vm363, %v763, 0
      %v771 = vsel %vm363, %v765, 0
      %773 = vmatpush.msra.mxu0 0.0
      %774 = vmatpush.msra.mxu0 0.0
      %775 = vmatpush.msra.mxu0 0.0
      %776 = vmatpush.msra.mxu0 0.0
      %777 = vmatpush.msra.mxu0 0.0
      %778 = vmatpush.msra.mxu0 0.0
      %779 = vmatpush.msra.mxu0 0.0
      %780 = vmatpush.msra.mxu0 0.0
      %781 = vmatpush.msra.mxu0 0.0
      %782 = vmatpush.msra.mxu0 0.0
      %783 = vmatpush.msra.mxu0 0.0
      %784 = vmatpush.msra.mxu0 0.0
      %785 = vmatpush.msra.mxu0 0.0
      %786 = vmatpush.msra.mxu0 0.0
      %787 = vmatpush.msra.mxu0 0.0
      %788 = vmatpush.msra.mxu0 %v664
      %789 = vmatmul.f32.gmra.mxu0 %v768
      %v790 = vpop.f32.mrf.mxu0
      %v791 = vadd.f32 0.0, %v790
      %792 = vmatmul.f32.gmra.mxu0 %v771
      %v793 = vpop.f32.mrf.mxu0
      %v794 = vadd.f32 0.0, %v793
      %795 = vdwg.mxu0
      %798 = vrot.lane.b32.xlu0 %v791, 8
      %v799 = vpop.permute.xlu0 %798
      %800 = vrot.lane.b32.xlu0 %v794, 8
      %v801 = vpop.permute.xlu0 %800
      %v804 = vadd.f32 %v689, %v799
      %v805 = vadd.f32 %v692, %v801
      %v806 = vxor.u32 %v804, 2147483648
      %v807 = vxor.u32 %v805, 2147483648
      %v808 = vmul.f32 %v806, 1.442695
      %v809 = vpow.pop %v808
      %v810 = vmul.f32 %v807, 1.442695
      %v811 = vpow.pop %v810
      %v812 = vadd.f32 %v809, 1.0
      %v813 = vadd.f32 %v811, 1.0
      %v814 = vrcp.pop %v812
      %v815 = vmul.f32 %v812, %v814
      %v816 = vsub.f32 1.0, %v815
      %v817 = vmul.f32 %v814, %v816
      %v818 = vadd.f32 %v814, %v817
      %vm819 = vweird.f32 %v812
      %vm820 = vweird.f32 %v814
      %vm821 = vmor %vm819, %vm820
      %v822 = vsel %vm821, %v814, %v818
      %v823 = vand.u32 2147483647, %v812
      %vm824 = vcmp.eq.f32.partialorder %v823, 8.507059e+37
      %v825 = vand.u32 %v812, 2147483648
      %v826 = vor.u32 1.1754944e-38, %v825
      %v827 = vsel %vm824, %v826, %v822
      %v828 = vmul.f32 1.0, %v827
      %v829 = vrcp.pop %v813
      %v830 = vmul.f32 %v813, %v829
      %v831 = vsub.f32 1.0, %v830
      %v832 = vmul.f32 %v829, %v831
      %v833 = vadd.f32 %v829, %v832
      %vm834 = vweird.f32 %v813
      %vm835 = vweird.f32 %v829
      %vm836 = vmor %vm834, %vm835
      %v837 = vsel %vm836, %v829, %v833
      %v838 = vand.u32 2147483647, %v813
      %vm839 = vcmp.eq.f32.partialorder %v838, 8.507059e+37
      %v840 = vand.u32 %v813, 2147483648
      %v841 = vor.u32 1.1754944e-38, %v840
      %v842 = vsel %vm839, %v841, %v837
      %v843 = vmul.f32 1.0, %v842
      %v844 = vmul.f32 %v804, %v828
      %v845 = vmul.f32 %v805, %v843
      %v846 = vld [vmem:[%s4 + $0x48] sm:$0xff]
      %v847 = vld [vmem:[%s4 + $0x50] sm:$0xff]
      %v848 = vld [vmem:[%s4 + $0x58] sm:$0xff]
      %v849 = vld [vmem:[%s4 + $0x60] sm:$0xff]
      %v850 = vld [vmem:[%s4 + $0x68] sm:$0xff]
      %v851 = vld [vmem:[%s4 + $0x70] sm:$0xff]
      %v852 = vld [vmem:[%s4 + $0x78] sm:$0xff]
      %v853 = vld [vmem:[%s4 + $0x80] sm:$0xff]
      %856 = vrot.lane.b32.xlu0 %v844, 120
      %v857 = vpop.permute.xlu0 %856
      %858 = vrot.lane.b32.xlu0 %v845, 120
      %v859 = vpop.permute.xlu0 %858
      %vm860 = vcmask 261120
      %v861 = vsel %vm860, %v857, 0
      %v863 = vsel %vm860, %v859, 0
      %865 = vmatpush.msra.mxu0 0.0
      %866 = vmatpush.msra.mxu0 0.0
      %867 = vmatpush.msra.mxu0 0.0
      %868 = vmatpush.msra.mxu0 0.0
      %869 = vmatpush.msra.mxu0 0.0
      %870 = vmatpush.msra.mxu0 0.0
      %871 = vmatpush.msra.mxu0 0.0
      %872 = vmatpush.msra.mxu0 0.0
      %873 = vmatpush.msra.mxu0 0.0
      %874 = vmatpush.msra.mxu0 0.0
      %875 = vmatpush.msra.mxu0 0.0
      %876 = vmatpush.msra.mxu0 0.0
      %877 = vmatpush.msra.mxu0 %v849
      %878 = vmatpush.msra.mxu0 %v848
      %879 = vmatpush.msra.mxu0 %v847
      %880 = vmatpush.msra.mxu0 %v846
      %881 = vmatmul.f32.gmra.mxu0 %v861
      %v882 = vpop.f32.mrf.mxu0
      %v883 = vadd.f32 0.0, %v882
      %884 = vmatmul.f32.gmra.mxu0 %v863
      %v885 = vpop.f32.mrf.mxu0
      %v886 = vadd.f32 0.0, %v885
      %887 = vdwg.mxu0
      %v888 = vpack.c.bf16 %v886, %v883
      %889 = vmatpush.bf16.msra.mxu0 0
      %890 = vmatpush.bf16.msra.mxu0 0
      %891 = vmatpush.bf16.msra.mxu0 0
      %892 = vmatpush.bf16.msra.mxu0 0
      %893 = vmatpush.bf16.msra.mxu0 0
      %894 = vmatpush.bf16.msra.mxu0 0
      %895 = vmatpush.bf16.msra.mxu0 0
      %896 = vmatpush.bf16.msra.mxu0 %v888
      %897 = vmatmul.bf16.gmra.mxu0 %v697
      %v898 = vpop.f32.mrf.mxu0
      %v899 = vadd.f32 0.0, %v898
      %v900 = vpop.f32.mrf.mxu0
      %v901 = vadd.f32 0.0, %v900
      %902 = vmatmul.bf16.gmra.mxu0 %v700
      %v903 = vpop.f32.mrf.mxu0
      %v904 = vadd.f32 0.0, %v903
      %v905 = vpop.f32.mrf.mxu0
      %v906 = vadd.f32 0.0, %v905
      %907 = vmatmul.bf16.gmra.mxu0 %v703
      %v908 = vpop.f32.mrf.mxu0
      %v909 = vadd.f32 0.0, %v908
      %v910 = vpop.f32.mrf.mxu0
      %v911 = vadd.f32 0.0, %v910
      %912 = vmatmul.bf16.gmra.mxu0 %v706
      %v913 = vpop.f32.mrf.mxu0
      %v914 = vadd.f32 0.0, %v913
      %v915 = vpop.f32.mrf.mxu0
      %v916 = vadd.f32 0.0, %v915
      %917 = vdwg.mxu0
      %926 = vrot.lane.b32.xlu0 %v638, 120
      %v927 = vpop.permute.xlu0 %926
      %928 = vrot.lane.b32.xlu0 %v641, 120
      %v929 = vpop.permute.xlu0 %928
      %930 = vrot.lane.b32.xlu0 %v644, 120
      %v931 = vpop.permute.xlu0 %930
      %932 = vrot.lane.b32.xlu0 %v647, 120
      %v933 = vpop.permute.xlu0 %932
      %934 = vrot.lane.b32.xlu0 %v650, 120
      %v935 = vpop.permute.xlu0 %934
      %936 = vrot.lane.b32.xlu0 %v653, 120
      %v937 = vpop.permute.xlu0 %936
      %938 = vrot.lane.b32.xlu0 %v656, 120
      %v939 = vpop.permute.xlu0 %938
      %940 = vrot.lane.b32.xlu0 %v659, 120
      %v941 = vpop.permute.xlu0 %940
      %v950 = vmul.f32 %v899, %v927
      %v951 = vmul.f32 %v901, %v929
      %v952 = vmul.f32 %v904, %v931
      %v953 = vmul.f32 %v906, %v933
      %v954 = vmul.f32 %v909, %v935
      %v955 = vmul.f32 %v911, %v937
      %v956 = vmul.f32 %v914, %v939
      %v957 = vmul.f32 %v916, %v941
      %v958 = vpack.c.bf16 %v951, %v950
      %v959 = vpack.c.bf16 %v953, %v952
      %v960 = vpack.c.bf16 %v955, %v954
      %v961 = vpack.c.bf16 %v957, %v956
      %962 = vmatpush.bf16.msra.mxu0 0
      %963 = vmatpush.bf16.msra.mxu0 0
      %964 = vmatpush.bf16.msra.mxu0 0
      %965 = vmatpush.bf16.msra.mxu0 0
      %966 = vmatpush.bf16.msra.mxu0 %v961
      %967 = vmatpush.bf16.msra.mxu0 %v960
      %968 = vmatpush.bf16.msra.mxu0 %v959
      %969 = vmatpush.bf16.msra.mxu0 %v958
      %970 = vmatmul.bf16.gmra.mxu0 %v751
      %v971 = vpop.f32.mrf.mxu0
      %v972 = vadd.f32 0.0, %v971
      %v973 = vpop.f32.mrf.mxu0
      %v974 = vadd.f32 0.0, %v973
      %975 = vdwg.mxu0
      %v977 = vsel %vm860, %v972, 0
      %v980 = vsel %vm860, %v974, 0
      %982 = vmatpush.msra.mxu0 0.0
      %983 = vmatpush.msra.mxu0 0.0
      %984 = vmatpush.msra.mxu0 0.0
      %985 = vmatpush.msra.mxu0 0.0
      %986 = vmatpush.msra.mxu0 0.0
      %987 = vmatpush.msra.mxu0 0.0
      %988 = vmatpush.msra.mxu0 0.0
      %989 = vmatpush.msra.mxu0 0.0
      %990 = vmatpush.msra.mxu0 0.0
      %991 = vmatpush.msra.mxu0 0.0
      %992 = vmatpush.msra.mxu0 0.0
      %993 = vmatpush.msra.mxu0 0.0
      %994 = vmatpush.msra.mxu0 %v853
      %995 = vmatpush.msra.mxu0 %v852
      %996 = vmatpush.msra.mxu0 %v851
      %997 = vmatpush.msra.mxu0 %v850
      %998 = vmatmul.f32.gmra.mxu0 %v977
      %v999 = vpop.f32.mrf.mxu0
      %v1000 = vadd.f32 0.0, %v999
      %1001 = vmatmul.f32.gmra.mxu0 %v980
      %v1002 = vpop.f32.mrf.mxu0
      %v1003 = vadd.f32 0.0, %v1002
      %1004 = vdwg.mxu0
      %1007 = vrot.lane.b32.xlu0 %v1000, 32
      %v1008 = vpop.permute.xlu0 %1007
      %1009 = vrot.lane.b32.xlu0 %v1003, 32
      %v1010 = vpop.permute.xlu0 %1009
      %v1013 = vadd.f32 %v883, %v1008
      %v1014 = vadd.f32 %v886, %v1010
      %v1015 = vxor.u32 %v1013, 2147483648
      %v1016 = vxor.u32 %v1014, 2147483648
      %v1017 = vmul.f32 %v1015, 1.442695
      %v1018 = vpow.pop %v1017
      %v1019 = vmul.f32 %v1016, 1.442695
      %v1020 = vpow.pop %v1019
      %v1021 = vadd.f32 %v1018, 1.0
      %v1022 = vadd.f32 %v1020, 1.0
      %v1023 = vrcp.pop %v1021
      %v1024 = vmul.f32 %v1021, %v1023
      %v1025 = vsub.f32 1.0, %v1024
      %v1026 = vmul.f32 %v1023, %v1025
      %v1027 = vadd.f32 %v1023, %v1026
      %vm1028 = vweird.f32 %v1021
      %vm1029 = vweird.f32 %v1023
      %vm1030 = vmor %vm1028, %vm1029
      %v1031 = vsel %vm1030, %v1023, %v1027
      %v1032 = vand.u32 2147483647, %v1021
      %vm1033 = vcmp.eq.f32.partialorder %v1032, 8.507059e+37
      %v1034 = vand.u32 %v1021, 2147483648
      %v1035 = vor.u32 1.1754944e-38, %v1034
      %v1036 = vsel %vm1033, %v1035, %v1031
      %v1037 = vmul.f32 1.0, %v1036
      %v1038 = vrcp.pop %v1022
      %v1039 = vmul.f32 %v1022, %v1038
      %v1040 = vsub.f32 1.0, %v1039
      %v1041 = vmul.f32 %v1038, %v1040
      %v1042 = vadd.f32 %v1038, %v1041
      %vm1043 = vweird.f32 %v1022
      %vm1044 = vweird.f32 %v1038
      %vm1045 = vmor %vm1043, %vm1044
      %v1046 = vsel %vm1045, %v1038, %v1042
      %v1047 = vand.u32 2147483647, %v1022
      %vm1048 = vcmp.eq.f32.partialorder %v1047, 8.507059e+37
      %v1049 = vand.u32 %v1022, 2147483648
      %v1050 = vor.u32 1.1754944e-38, %v1049
      %v1051 = vsel %vm1048, %v1050, %v1046
      %v1052 = vmul.f32 1.0, %v1051
      %v1053 = vmul.f32 %v1013, %v1037
      %v1054 = vmul.f32 %v1014, %v1052
      %v1055 = vld [vmem:[%s4 + $0x88] sm:$0xff]
      %v1056 = vld [vmem:[%s4 + $0x90] sm:$0xff]
      %v1057 = vld [vmem:[%s4 + $0x98] sm:$0xff]
      %v1058 = vld [vmem:[%s4 + $0xa0] sm:$0xff]
      %v1059 = vld [vmem:[%s4 + $0xa8] sm:$0xff]
      %v1060 = vld [vmem:[%s4 + $0xb0] sm:$0xff]
      %v1061 = vld [vmem:[%s4 + $0xb8] sm:$0xff]
      %v1062 = vld [vmem:[%s4 + $0xc0] sm:$0xff]
      %1065 = vrot.lane.b32.xlu0 %v1053, 96
      %v1066 = vpop.permute.xlu0 %1065
      %1067 = vrot.lane.b32.xlu0 %v1054, 96
      %v1068 = vpop.permute.xlu0 %1067
      %v1069 = vsel %vm860, %v1066, 0
      %v1071 = vsel %vm860, %v1068, 0
      %1073 = vmatpush.msra.mxu0 0.0
      %1074 = vmatpush.msra.mxu0 0.0
      %1075 = vmatpush.msra.mxu0 0.0
      %1076 = vmatpush.msra.mxu0 0.0
      %1077 = vmatpush.msra.mxu0 0.0
      %1078 = vmatpush.msra.mxu0 0.0
      %1079 = vmatpush.msra.mxu0 0.0
      %1080 = vmatpush.msra.mxu0 0.0
      %1081 = vmatpush.msra.mxu0 0.0
      %1082 = vmatpush.msra.mxu0 0.0
      %1083 = vmatpush.msra.mxu0 0.0
      %1084 = vmatpush.msra.mxu0 0.0
      %1085 = vmatpush.msra.mxu0 %v1058
      %1086 = vmatpush.msra.mxu0 %v1057
      %1087 = vmatpush.msra.mxu0 %v1056
      %1088 = vmatpush.msra.mxu0 %v1055
      %1089 = vmatmul.f32.gmra.mxu0 %v1069
      %v1090 = vpop.f32.mrf.mxu0
      %v1091 = vadd.f32 0.0, %v1090
      %1092 = vmatmul.f32.gmra.mxu0 %v1071
      %v1093 = vpop.f32.mrf.mxu0
      %v1094 = vadd.f32 0.0, %v1093
      %1095 = vdwg.mxu0
      %v1096 = vpack.c.bf16 %v1094, %v1091
      %1097 = vmatpush.bf16.msra.mxu0 0
      %1098 = vmatpush.bf16.msra.mxu0 0
      %1099 = vmatpush.bf16.msra.mxu0 0
      %1100 = vmatpush.bf16.msra.mxu0 0
      %1101 = vmatpush.bf16.msra.mxu0 0
      %1102 = vmatpush.bf16.msra.mxu0 0
      %1103 = vmatpush.bf16.msra.mxu0 0
      %1104 = vmatpush.bf16.msra.mxu0 %v1096
      %1105 = vmatmul.bf16.gmra.mxu0 %v697
      %v1106 = vpop.f32.mrf.mxu0
      %v1107 = vadd.f32 0.0, %v1106
      %v1108 = vpop.f32.mrf.mxu0
      %v1109 = vadd.f32 0.0, %v1108
      %1110 = vmatmul.bf16.gmra.mxu0 %v700
      %v1111 = vpop.f32.mrf.mxu0
      %v1112 = vadd.f32 0.0, %v1111
      %v1113 = vpop.f32.mrf.mxu0
      %v1114 = vadd.f32 0.0, %v1113
      %1115 = vmatmul.bf16.gmra.mxu0 %v703
      %v1116 = vpop.f32.mrf.mxu0
      %v1117 = vadd.f32 0.0, %v1116
      %v1118 = vpop.f32.mrf.mxu0
      %v1119 = vadd.f32 0.0, %v1118
      %1120 = vmatmul.bf16.gmra.mxu0 %v706
      %v1121 = vpop.f32.mrf.mxu0
      %v1122 = vadd.f32 0.0, %v1121
      %v1123 = vpop.f32.mrf.mxu0
      %v1124 = vadd.f32 0.0, %v1123
      %1125 = vdwg.mxu0
      %1126 = vrot.lane.b32.xlu0 %v638, 88
      %v1127 = vpop.permute.xlu0 %1126
      %1128 = vrot.lane.b32.xlu0 %v641, 88
      %v1129 = vpop.permute.xlu0 %1128
      %1130 = vrot.lane.b32.xlu0 %v644, 88
      %v1131 = vpop.permute.xlu0 %1130
      %1132 = vrot.lane.b32.xlu0 %v647, 88
      %v1133 = vpop.permute.xlu0 %1132
      %1134 = vrot.lane.b32.xlu0 %v650, 88
      %v1135 = vpop.permute.xlu0 %1134
      %1136 = vrot.lane.b32.xlu0 %v653, 88
      %v1137 = vpop.permute.xlu0 %1136
      %1138 = vrot.lane.b32.xlu0 %v656, 88
      %v1139 = vpop.permute.xlu0 %1138
      %1140 = vrot.lane.b32.xlu0 %v659, 88
      %v1141 = vpop.permute.xlu0 %1140
      %v1150 = vmul.f32 %v1107, %v1127
      %v1151 = vmul.f32 %v1109, %v1129
      %v1152 = vmul.f32 %v1112, %v1131
      %v1153 = vmul.f32 %v1114, %v1133
      %v1154 = vmul.f32 %v1117, %v1135
      %v1155 = vmul.f32 %v1119, %v1137
      %v1156 = vmul.f32 %v1122, %v1139
      %v1157 = vmul.f32 %v1124, %v1141
      %v1158 = vpack.c.bf16 %v1151, %v1150
      %v1159 = vpack.c.bf16 %v1153, %v1152
      %v1160 = vpack.c.bf16 %v1155, %v1154
      %v1161 = vpack.c.bf16 %v1157, %v1156
      %1162 = vmatpush.bf16.msra.mxu0 0
      %1163 = vmatpush.bf16.msra.mxu0 0
      %1164 = vmatpush.bf16.msra.mxu0 0
      %1165 = vmatpush.bf16.msra.mxu0 0
      %1166 = vmatpush.bf16.msra.mxu0 %v1161
      %1167 = vmatpush.bf16.msra.mxu0 %v1160
      %1168 = vmatpush.bf16.msra.mxu0 %v1159
      %1169 = vmatpush.bf16.msra.mxu0 %v1158
      %1170 = vmatmul.bf16.gmra.mxu0 %v751
      %v1171 = vpop.f32.mrf.mxu0
      %v1172 = vadd.f32 0.0, %v1171
      %v1173 = vpop.f32.mrf.mxu0
      %v1174 = vadd.f32 0.0, %v1173
      %1175 = vdwg.mxu0
      %v1177 = vsel %vm860, %v1172, 0
      %v1180 = vsel %vm860, %v1174, 0
      %1182 = vmatpush.msra.mxu0 0.0
      %1183 = vmatpush.msra.mxu0 0.0
      %1184 = vmatpush.msra.mxu0 0.0
      %1185 = vmatpush.msra.mxu0 0.0
      %1186 = vmatpush.msra.mxu0 0.0
      %1187 = vmatpush.msra.mxu0 0.0
      %1188 = vmatpush.msra.mxu0 0.0
      %1189 = vmatpush.msra.mxu0 0.0
      %1190 = vmatpush.msra.mxu0 0.0
      %1191 = vmatpush.msra.mxu0 0.0
      %1192 = vmatpush.msra.mxu0 0.0
      %1193 = vmatpush.msra.mxu0 0.0
      %1194 = vmatpush.msra.mxu0 %v1062
      %1195 = vmatpush.msra.mxu0 %v1061
      %1196 = vmatpush.msra.mxu0 %v1060
      %1197 = vmatpush.msra.mxu0 %v1059
      %1198 = vmatmul.f32.gmra.mxu0 %v1177
      %v1199 = vpop.f32.mrf.mxu0
      %v1200 = vadd.f32 0.0, %v1199
      %1201 = vmatmul.f32.gmra.mxu0 %v1180
      %v1202 = vpop.f32.mrf.mxu0
      %v1203 = vadd.f32 0.0, %v1202
      %1204 = vdwg.mxu0
      %1207 = vrot.lane.b32.xlu0 %v1200, 32
      %v1208 = vpop.permute.xlu0 %1207
      %1209 = vrot.lane.b32.xlu0 %v1203, 32
      %v1210 = vpop.permute.xlu0 %1209
      %v1213 = vadd.f32 %v1091, %v1208
      %v1214 = vadd.f32 %v1094, %v1210
      %1217 = vrot.lane.b32.xlu0 %v1213, 96
      %v1218 = vpop.permute.xlu0 %1217
      %1219 = vrot.lane.b32.xlu0 %v1214, 96
      %v1220 = vpop.permute.xlu0 %1219
      %1223 = vst.msk [vmem:[%s278] sm:$0xff] %vm363, %v1218
      %1224 = vst.msk [vmem:[%s278 + $0x8] sm:$0xff] %vm363, %v1220
      %p1225 = scmp.lt.s32.totalorder %s16, 3
      %s1226 = scalar_select %p1225, %s16, 3
      %s1227 = smul.addr %s1226, 2
      %s1228 = smul.addr %s1227, 8
      %s1229 = scalar_lea.vmem %s5, %s1228
      // Predicated region
      $region41: #{tpu_custom_call.1} parent=39 // pred_check
        %p1230 = pneg %p159
      $region42: #{tpu_custom_call.1} parent=39 // pred_check_branch
        %1232 = sbr.rel (%p1230) target = $region44
      $region43: #{tpu_custom_call.1} parent=39 // pred_region
        _
      $region44: #{tpu_custom_call.1} parent=39 // pred_fallthru
        _
    $region40: #{tpu_custom_call.1} parent=5 // pred_fallthru
      _
    %p1233 = scmp.le.s32.totalorder 2, %s11
    // Predicated region
    $region45: #{tpu_custom_call.1} parent=5 // pred_check
      %p1234 = pneg %p1233
    $region46: #{tpu_custom_call.1} parent=5 // pred_check_branch
      %1236 = sbr.rel (%p1234) target = $region48
    $region47: #{tpu_custom_call.1} parent=5 // pred_region
      %s1237 = ssub.s32 %s11, 2
      // Predicated region
      $region49: #{tpu_custom_call.1} parent=47 // pred_check
        %p1238 = pneg %p165
      $region50: #{tpu_custom_call.1} parent=47 // pred_check_branch
        %1240 = sbr.rel (%p1238) target = $region52
      $region51: #{tpu_custom_call.1} parent=47 // pred_region
        %p1241 = scmp.lt.s32.totalorder %s17, 3
        %s1242 = scalar_select %p1241, %s17, 3
        %s1243 = smul.addr %s1242, 2
        %s1244 = smul.addr %s1243, 8
        %s1245 = scalar_lea.vmem %s5, %s1244
      $region52: #{tpu_custom_call.1} parent=47 // pred_fallthru
        _
    $region48: #{tpu_custom_call.1} parent=5 // pred_fallthru
      _
  $region6: #{tpu_custom_call.1} parent=0 // loop_footer
    %s15 = sadd.s32 1, %s11
  $region7: #{tpu_custom_call.1} parent=0 // loop_footer_branch
    %10 = sbr.rel target = $region3
  $region8: #{tpu_custom_call.1} parent=0 // loop_exit
    _

</llo_original>
